<compile_context>
chip_gen: v6e
topology: v6e:2x2x1
jax: 0.10.0
libtpu: 0.0.40
codegen_flags: <defaults>
</compile_context>

<pallas_src>
import math

import jax
import jax.numpy as jnp
from jax import lax
from jax.experimental import pallas as pl
from jax.experimental.pallas import tpu as pltpu


def _attention_kernel(img_ref, txt_ref, w_ref, p_ref, out_ref):
    f32 = jnp.float32
    img = img_ref[0]                     # [HW, C]  image rows for this batch element
    txt = txt_ref[0]                     # [1, C]   text embedding for this batch element

    p = p_ref[...]                       # [6, C]   packed row params
    b1, b2, bv, bo, gamma, beta = (p[i:i + 1] for i in range(6))

    # ---- text MLP: Linear -> ReLU -> Linear (weights pre-transposed: y = x @ W^T == x @ w_ref[i])
    t = jnp.maximum(jnp.dot(txt, w_ref[0], preferred_element_type=f32) + b1, 0.0)
    t = jnp.dot(t, w_ref[1], preferred_element_type=f32) + b2            # [1, C]

    # ---- degenerate multi-head attention ----
    # key == value == one text token repeated at every position  =>  softmax rows are exactly
    # uniform (exp(0)/HW) and each head's output equals its value slice, independent of q/k.
    # Hence attention output == value projection, and out_proj is applied once to the [1,C]
    # row and broadcast -- q/k projection weights do not affect the result at all.
    v = jnp.dot(t, w_ref[2], preferred_element_type=f32) + bv            # [1, C]
    o = jnp.dot(v, w_ref[3], preferred_element_type=f32) + bo            # [1, C]  (out_proj)

    # ---- residual + LayerNorm over the embed dim ----
    x = img + o                                        # broadcast over the HW rows
    mu = jnp.mean(x, axis=-1, keepdims=True)
    xc = x - mu
    var = jnp.mean(xc * xc, axis=-1, keepdims=True)
    xn = xc * lax.rsqrt(var + 1e-5)
    out_ref[0] = (xn * gamma + beta).astype(out_ref.dtype)


def attention_module_forward(image, text, params, num_heads):
    """image: [B, C, H, W], text: [B, C]  ->  [B, C, H, W]"""
    B, C, H, W = image.shape
    HW = H * W
    assert C % num_heads == 0

    img_bsc = jnp.transpose(image.reshape(B, C, HW), (0, 2, 1))          # [B, HW, C]
    text3 = text.reshape(B, 1, C)                                        # [B, 1, C]

    # Only the value part of in_proj is needed (q/k provably cancel out of the forward).
    _, _, wv = jnp.split(params["in_proj_weight"], 3, axis=0)
    _, _, bv = jnp.split(params["in_proj_bias"], 3, axis=0)

    # Pre-transpose + pack all parameters into two small VMEM slabs.
    w_pack = jnp.stack(
        [params["mlp_w1"].T, params["mlp_w2"].T, wv.T, params["out_proj_w"].T], axis=0
    )                                                                    # [4, C, C]
    p_pack = jnp.stack(
        [params["mlp_b1"], params["mlp_b2"], bv, params["out_proj_b"],
         params["ln_gamma"], params["ln_beta"]], axis=0
    )                                                                    # [6, C]

    out = pl.pallas_call(
        _attention_kernel,
        out_shape=jax.ShapeDtypeStruct((B, HW, C), image.dtype),
        grid=(B,),
        in_specs=[
            pl.BlockSpec((1, HW, C), lambda b: (b, 0, 0)),   # image: one batch row per step
            pl.BlockSpec((1, 1, C), lambda b: (b, 0, 0)),    # text:  one batch row per step
            pl.BlockSpec((4, C, C), lambda b: (0, 0, 0)),    # packed weights (grid-invariant)
            pl.BlockSpec((6, C), lambda b: (0, 0)),          # packed biases/LN (grid-invariant)
        ],
        out_specs=pl.BlockSpec((1, HW, C), lambda b: (b, 0, 0)),
        compiler_params=pltpu.CompilerParams(dimension_semantics=("parallel",)),
    )(img_bsc, text3, w_pack, p_pack)

    return jnp.transpose(out, (0, 2, 1)).reshape(B, C, H, W)


def reference_forward(image, text, params, num_heads):
    """Pure-JAX reference of the PyTorch forward (full softmax path, for verification)."""
    B, C, H, W = image.shape
    HW = H * W
    hd = C // num_heads
    img = jnp.transpose(image.reshape(B, C, HW), (0, 2, 1))              # [B, HW, C]

    t = jnp.maximum(text @ params["mlp_w1"].T + params["mlp_b1"], 0.0)
    t = t @ params["mlp_w2"].T + params["mlp_b2"]                        # [B, C]

    wq, wk, wv = jnp.split(params["in_proj_weight"], 3, axis=0)
    bq, bk, bv = jnp.split(params["in_proj_bias"], 3, axis=0)
    q = (img @ wq.T + bq) / math.sqrt(hd)                                # [B, HW, C]
    k = jnp.broadcast_to((t @ wk.T + bk)[:, None, :], (B, HW, C))
    v = jnp.broadcast_to((t @ wv.T + bv)[:, None, :], (B, HW, C))

    qh = q.reshape(B, HW, num_heads, hd)
    kh = k.reshape(B, HW, num_heads, hd)
    vh = v.reshape(B, HW, num_heads, hd)
    s = jnp.einsum("bqhd,bkhd->bhqk", qh, kh)
    p = jax.nn.softmax(s, axis=-1)
    o = jnp.einsum("bhqk,bkhd->bqhd", p, vh).reshape(B, HW, C)
    o = o @ params["out_proj_w"].T + params["out_proj_b"]

    x = o + img
    mean = x.mean(-1, keepdims=True)
    var = ((x - mean) ** 2).mean(-1, keepdims=True)
    x = (x - mean) / jnp.sqrt(var + 1e-5)
    x = x * params["ln_gamma"] + params["ln_beta"]
    return jnp.transpose(x, (0, 2, 1)).reshape(B, C, H, W)


if __name__ == "__main__":
    B, C, H, W = 2, 32, 8, 8       # embed_size = 32, spatial 8x8 -> seq len 64
    num_heads = 8

    key = jax.random.PRNGKey(0)
    ks = jax.random.split(key, 12)
    s = 0.1
    params = {
        "mlp_w1": jax.random.normal(ks[0], (C, C), jnp.float32) * s,
        "mlp_b1": jax.random.normal(ks[1], (C,), jnp.float32) * s,
        "mlp_w2": jax.random.normal(ks[2], (C, C), jnp.float32) * s,
        "mlp_b2": jax.random.normal(ks[3], (C,), jnp.float32) * s,
        "in_proj_weight": jax.random.normal(ks[4], (3 * C, C), jnp.float32) * s,
        "in_proj_bias": jax.random.normal(ks[5], (3 * C,), jnp.float32) * s,
        "out_proj_w": jax.random.normal(ks[6], (C, C), jnp.float32) * s,
        "out_proj_b": jax.random.normal(ks[7], (C,), jnp.float32) * s,
        "ln_gamma": jnp.ones((C,), jnp.float32),
        "ln_beta": jnp.zeros((C,), jnp.float32),
    }

    image = jax.random.normal(ks[8], (B, C, H, W), jnp.float32)
    text = jax.random.normal(ks[9], (B, C), jnp.float32)

    out = attention_module_forward(image, text, params, num_heads)
    out = jax.block_until_ready(out)
    assert out.shape == (B, C, H, W), out.shape

    ref = reference_forward(image, text, params, num_heads)
    max_err = float(jnp.max(jnp.abs(out - ref)))
    assert max_err < 1e-3, f"max abs error {max_err}"

    print("KERNEL_OK")
</pallas_src>

<mosaic_0001>
module attributes {stable_mosaic.version = 11 : i64} {
  func.func @_attention_kernel(%arg0: i32, %arg1: memref<1x64x32xf32, #tpu.memory_space<vmem>>, %arg2: memref<1x1x32xf32, #tpu.memory_space<vmem>>, %arg3: memref<4x32x32xf32, #tpu.memory_space<vmem>>, %arg4: memref<6x32xf32, #tpu.memory_space<vmem>>, %arg5: memref<1x64x32xf32, #tpu.memory_space<vmem>>) attributes {dimension_semantics = [#tpu.dimension_semantics<parallel>], iteration_bounds = array<i64: 2>, scalar_prefetch = 0 : i64, scratch_operands = 0 : i64, tpu.core_type = #tpu.core_type<tc>, window_params = [{transform_indices = @transform_0, window_bounds = array<i64: 1, 64, 32>}, {transform_indices = @transform_1, window_bounds = array<i64: 1, 1, 32>}, {pipeline_mode = #tpu.pipeline_mode<synchronous>, transform_indices = @transform_2, window_bounds = array<i64: 4, 32, 32>}, {pipeline_mode = #tpu.pipeline_mode<synchronous>, transform_indices = @transform_3, window_bounds = array<i64: 6, 32>}, {transform_indices = @transform_4, window_bounds = array<i64: 1, 64, 32>}]} {
    %c0 = arith.constant 0 : index
    %c0_0 = arith.constant 0 : index
    %c0_1 = arith.constant 0 : index
    %0 = vector.load %arg1[%c0, %c0_0, %c0_1] : memref<1x64x32xf32, #tpu.memory_space<vmem>>, vector<1x64x32xf32>
    %1 = vector.shape_cast %0 : vector<1x64x32xf32> to vector<64x32xf32>
    %c0_2 = arith.constant 0 : index
    %c0_3 = arith.constant 0 : index
    %c0_4 = arith.constant 0 : index
    %2 = vector.load %arg2[%c0_2, %c0_3, %c0_4] : memref<1x1x32xf32, #tpu.memory_space<vmem>>, vector<1x1x32xf32>
    %3 = vector.shape_cast %2 : vector<1x1x32xf32> to vector<1x32xf32>
    %c0_5 = arith.constant 0 : index
    %c0_6 = arith.constant 0 : index
    %4 = vector.load %arg4[%c0_5, %c0_6] : memref<6x32xf32, #tpu.memory_space<vmem>>, vector<6x32xf32>
    %5 = vector.extract_strided_slice %4 {offsets = [0, 0], sizes = [1, 32], strides = [1, 1]} : vector<6x32xf32> to vector<1x32xf32>
    %6 = vector.extract_strided_slice %4 {offsets = [1, 0], sizes = [1, 32], strides = [1, 1]} : vector<6x32xf32> to vector<1x32xf32>
    %7 = vector.extract_strided_slice %4 {offsets = [2, 0], sizes = [1, 32], strides = [1, 1]} : vector<6x32xf32> to vector<1x32xf32>
    %8 = vector.extract_strided_slice %4 {offsets = [3, 0], sizes = [1, 32], strides = [1, 1]} : vector<6x32xf32> to vector<1x32xf32>
    %9 = vector.extract_strided_slice %4 {offsets = [4, 0], sizes = [1, 32], strides = [1, 1]} : vector<6x32xf32> to vector<1x32xf32>
    %10 = vector.extract_strided_slice %4 {offsets = [5, 0], sizes = [1, 32], strides = [1, 1]} : vector<6x32xf32> to vector<1x32xf32>
    %c0_7 = arith.constant 0 : index
    %c0_8 = arith.constant 0 : index
    %c0_9 = arith.constant 0 : index
    %11 = vector.load %arg3[%c0_7, %c0_8, %c0_9] : memref<4x32x32xf32, #tpu.memory_space<vmem>>, vector<1x32x32xf32>
    %12 = vector.shape_cast %11 : vector<1x32x32xf32> to vector<32x32xf32>
    %cst = arith.constant dense<0.000000e+00> : vector<1x32xf32>
    %13 = tpu.matmul %3, %12, %cst {dimension_numbers = #tpu.dot_dimension_numbers<[1], [0], [0], [1], [0, 0, 1, 1], [], []>} : vector<1x32xf32>, vector<32x32xf32>, vector<1x32xf32> -> vector<1x32xf32>
    %14 = arith.addf %13, %5 : vector<1x32xf32>
    %cst_10 = arith.constant 0.000000e+00 : f32
    %15 = vector.broadcast %cst_10 : f32 to vector<1x32xf32>
    %16 = arith.maximumf %14, %15 : vector<1x32xf32>
    %c1 = arith.constant 1 : index
    %c0_11 = arith.constant 0 : index
    %c0_12 = arith.constant 0 : index
    %17 = vector.load %arg3[%c1, %c0_11, %c0_12] : memref<4x32x32xf32, #tpu.memory_space<vmem>>, vector<1x32x32xf32>
    %18 = vector.shape_cast %17 : vector<1x32x32xf32> to vector<32x32xf32>
    %cst_13 = arith.constant dense<0.000000e+00> : vector<1x32xf32>
    %19 = tpu.matmul %16, %18, %cst_13 {dimension_numbers = #tpu.dot_dimension_numbers<[1], [0], [0], [1], [0, 0, 1, 1], [], []>} : vector<1x32xf32>, vector<32x32xf32>, vector<1x32xf32> -> vector<1x32xf32>
    %20 = arith.addf %19, %6 : vector<1x32xf32>
    %c2 = arith.constant 2 : index
    %c0_14 = arith.constant 0 : index
    %c0_15 = arith.constant 0 : index
    %21 = vector.load %arg3[%c2, %c0_14, %c0_15] : memref<4x32x32xf32, #tpu.memory_space<vmem>>, vector<1x32x32xf32>
    %22 = vector.shape_cast %21 : vector<1x32x32xf32> to vector<32x32xf32>
    %cst_16 = arith.constant dense<0.000000e+00> : vector<1x32xf32>
    %23 = tpu.matmul %20, %22, %cst_16 {dimension_numbers = #tpu.dot_dimension_numbers<[1], [0], [0], [1], [0, 0, 1, 1], [], []>} : vector<1x32xf32>, vector<32x32xf32>, vector<1x32xf32> -> vector<1x32xf32>
    %24 = arith.addf %23, %7 : vector<1x32xf32>
    %c3 = arith.constant 3 : index
    %c0_17 = arith.constant 0 : index
    %c0_18 = arith.constant 0 : index
    %25 = vector.load %arg3[%c3, %c0_17, %c0_18] : memref<4x32x32xf32, #tpu.memory_space<vmem>>, vector<1x32x32xf32>
    %26 = vector.shape_cast %25 : vector<1x32x32xf32> to vector<32x32xf32>
    %cst_19 = arith.constant dense<0.000000e+00> : vector<1x32xf32>
    %27 = tpu.matmul %24, %26, %cst_19 {dimension_numbers = #tpu.dot_dimension_numbers<[1], [0], [0], [1], [0, 0, 1, 1], [], []>} : vector<1x32xf32>, vector<32x32xf32>, vector<1x32xf32> -> vector<1x32xf32>
    %28 = arith.addf %27, %8 : vector<1x32xf32>
    %29 = vector.broadcast %28 : vector<1x32xf32> to vector<64x32xf32>
    %30 = arith.addf %1, %29 : vector<64x32xf32>
    %cst_20 = arith.constant dense<0.000000e+00> : vector<64xf32>
    %31 = vector.multi_reduction <add>, %30, %cst_20 [1] : vector<64x32xf32> to vector<64xf32>
    %32 = vector.shape_cast %31 : vector<64xf32> to vector<64x1xf32>
    %cst_21 = arith.constant 3.200000e+01 : f32
    %33 = vector.broadcast %cst_21 : f32 to vector<64x1xf32>
    %34 = arith.divf %32, %33 : vector<64x1xf32>
    %35 = vector.broadcast %34 : vector<64x1xf32> to vector<64x32xf32>
    %36 = arith.subf %30, %35 : vector<64x32xf32>
    %37 = arith.mulf %36, %36 : vector<64x32xf32>
    %cst_22 = arith.constant dense<0.000000e+00> : vector<64xf32>
    %38 = vector.multi_reduction <add>, %37, %cst_22 [1] : vector<64x32xf32> to vector<64xf32>
    %39 = vector.shape_cast %38 : vector<64xf32> to vector<64x1xf32>
    %cst_23 = arith.constant 3.200000e+01 : f32
    %40 = vector.broadcast %cst_23 : f32 to vector<64x1xf32>
    %41 = arith.divf %39, %40 : vector<64x1xf32>
    %cst_24 = arith.constant 9.99999974E-6 : f32
    %42 = vector.broadcast %cst_24 : f32 to vector<64x1xf32>
    %43 = arith.addf %41, %42 : vector<64x1xf32>
    %44 = math.rsqrt %43 : vector<64x1xf32>
    %45 = vector.broadcast %44 : vector<64x1xf32> to vector<64x32xf32>
    %46 = arith.mulf %36, %45 : vector<64x32xf32>
    %47 = vector.broadcast %9 : vector<1x32xf32> to vector<64x32xf32>
    %48 = arith.mulf %46, %47 : vector<64x32xf32>
    %49 = vector.broadcast %10 : vector<1x32xf32> to vector<64x32xf32>
    %50 = arith.addf %48, %49 : vector<64x32xf32>
    %c0_25 = arith.constant 0 : index
    %c0_26 = arith.constant 0 : index
    %c0_27 = arith.constant 0 : index
    %51 = vector.load %arg5[%c0_25, %c0_26, %c0_27] : memref<1x64x32xf32, #tpu.memory_space<vmem>>, vector<1x64x32xf32>
    %52 = vector.shape_cast %51 : vector<1x64x32xf32> to vector<64x32xf32>
    %53 = vector.shape_cast %50 : vector<64x32xf32> to vector<1x64x32xf32>
    tpu.vector_store %arg5[%c0_25, %c0_26, %c0_27], %53 {strides = array<i32>} : memref<1x64x32xf32, #tpu.memory_space<vmem>>, vector<1x64x32xf32>,
    return
  }
  func.func @transform_0(%arg0: i32) -> (i32, i32, i32) {
    %c0_i32 = arith.constant 0 : i32
    %c0_i32_0 = arith.constant 0 : i32
    %c0_i32_1 = arith.constant 0 : i32
    return %arg0, %c0_i32, %c0_i32_0 : i32, i32, i32
  }
  func.func @transform_1(%arg0: i32) -> (i32, i32, i32) {
    %c0_i32 = arith.constant 0 : i32
    %c0_i32_0 = arith.constant 0 : i32
    %c0_i32_1 = arith.constant 0 : i32
    return %arg0, %c0_i32, %c0_i32_0 : i32, i32, i32
  }
  func.func @transform_2(%arg0: i32) -> (i32, i32, i32) {
    %c0_i32 = arith.constant 0 : i32
    %c0_i32_0 = arith.constant 0 : i32
    %c0_i32_1 = arith.constant 0 : i32
    %c0_i32_2 = arith.constant 0 : i32
    return %c0_i32, %c0_i32_0, %c0_i32_1 : i32, i32, i32
  }
  func.func @transform_3(%arg0: i32) -> (i32, i32) {
    %c0_i32 = arith.constant 0 : i32
    %c0_i32_0 = arith.constant 0 : i32
    %c0_i32_1 = arith.constant 0 : i32
    return %c0_i32, %c0_i32_0 : i32, i32
  }
  func.func @transform_4(%arg0: i32) -> (i32, i32, i32) {
    %c0_i32 = arith.constant 0 : i32
    %c0_i32_0 = arith.constant 0 : i32
    %c0_i32_1 = arith.constant 0 : i32
    return %arg0, %c0_i32, %c0_i32_0 : i32, i32, i32
  }
}

</mosaic_0001>

<llo_original>
// kernel: tpu_custom_call.1
$region0: #{tpu_custom_call.1}
  #allocation0 [shape = 'u32[]', space=smem, size = 0x4, offset = 0x4, fixed_abs, tag = 'smem constant byte address 0x4 - core index']
  #allocation1 [shape = 'u32[144,128]{1,0:T(1,128)}', space=vmem, size = 0x12000, scoped, tag = 'internal scratch']
  %s0 = inlined_call_operand.vmem [shape: f32[2,64,32], index: 0, kind: input, shape index: {}]
  %s1 = inlined_call_operand.vmem [shape: f32[2,1,32], index: 1, kind: input, shape index: {}]
  %s2 = inlined_call_operand.vmem [shape: f32[4,32,32], index: 2, kind: input, shape index: {}]
  %s3 = inlined_call_operand.vmem [shape: f32[6,32], index: 3, kind: input, shape index: {}]
  %s4 = inlined_call_operand.vmem [shape: f32[2,64,32], index: 4, kind: output, shape index: {}]
  %s5 = sld [smem:[#allocation0]]
  $region49: #{tpu_custom_call.1} parent=0
    _
  %s7 = ssub.s32 1, %s5
  %s8 = scalar_select 0, %s7, %s5
  loop: start=0, step=1, limit=4
  $region2: #{tpu_custom_call.1} parent=0 // loop_pre_header
    _
  $region3: #{tpu_custom_call.1} parent=0 // loop_header
    %s10 = sphi 0, %s14
    %p11 = scmp.ge.s32.totalorder %s10, 4
    %s20 = sphi 0, %s22
    %s23 = sphi 0, %s20
    %s24 = sphi 0, %s23
    %s40 = sphi 0, %s24
    %s46 = sphi 0, %s48
    %s49 = sphi 0, %s46
    %s50 = sphi 0, %s49
    %s66 = sphi 0, %s50
    %s70 = sphi 0, %s70
    %s72 = sphi 0, %s70
    %s73 = sphi 0, %s72
    %s87 = sphi 0, %s73
    %s91 = sphi 0, %s91
    %s93 = sphi 0, %s91
    %s94 = sphi 0, %s93
    %s108 = sphi 0, %s94
    %s114 = sphi 0, %s116
    %s117 = sphi 0, %s114
    %s118 = sphi 0, %s117
    %s134 = sphi 0, %s118
  $region4: #{tpu_custom_call.1} parent=0 // loop_header_branch
    %13 = sbr.rel (%p11) target = $region8
  $region5: #{tpu_custom_call.1} parent=0 // loop_body
    %s15 = ssub.s32 %s10, 1
    %s16 = ssub.s32 %s10, 2
    %s17 = sadd.s32 %s10, 1
    %s18 = ssub.s32 %s10, %s17
    %p19 = scmp.eq.s32.totalorder %s18, 0
    %s21 = sadd.s32 %s20, 1
    %s22 = scalar_select %p19, %s20, %s21
    %p25 = pneg %p19
    %p26 = scmp.eq.s32.totalorder %s10, 1
    %p27 = por %p25, %p26
    %p28 = scmp.ne.s32.totalorder %s20, %s23
    %p29 = scmp.eq.s32.totalorder %s10, 0
    %p30 = por %p28, %p29
    %p31 = scmp.ne.s32.totalorder %s20, %s23
    %p32 = scmp.eq.s32.totalorder %s15, 1
    %p33 = por %p31, %p32
    %p34 = scmp.ne.s32.totalorder %s23, %s24
    %p35 = scmp.eq.s32.totalorder %s15, 0
    %p36 = por %p34, %p35
    %p37 = scmp.ne.s32.totalorder %s23, %s24
    %p38 = scmp.eq.s32.totalorder %s16, 1
    %p39 = por %p37, %p38
    %p41 = scmp.ne.s32.totalorder %s24, %s40
    %p42 = scmp.eq.s32.totalorder %s16, 0
    %p43 = por %p41, %p42
    %s44 = ssub.s32 %s10, %s17
    %p45 = scmp.eq.s32.totalorder %s44, 0
    %s47 = sadd.s32 %s46, 1
    %s48 = scalar_select %p45, %s46, %s47
    %p51 = pneg %p45
    %p52 = scmp.eq.s32.totalorder %s10, 1
    %p53 = por %p51, %p52
    %p54 = scmp.ne.s32.totalorder %s46, %s49
    %p55 = scmp.eq.s32.totalorder %s10, 0
    %p56 = por %p54, %p55
    %p57 = scmp.ne.s32.totalorder %s46, %s49
    %p58 = scmp.eq.s32.totalorder %s15, 1
    %p59 = por %p57, %p58
    %p60 = scmp.ne.s32.totalorder %s49, %s50
    %p61 = scmp.eq.s32.totalorder %s15, 0
    %p62 = por %p60, %p61
    %p63 = scmp.ne.s32.totalorder %s49, %s50
    %p64 = scmp.eq.s32.totalorder %s16, 1
    %p65 = por %p63, %p64
    %p67 = scmp.ne.s32.totalorder %s50, %s66
    %p68 = scmp.eq.s32.totalorder %s16, 0
    %p69 = por %p67, %p68
    %s71 = sadd.s32 %s70, 1
    %p74 = scmp.eq.s32.totalorder %s10, 1
    %p75 = scmp.ne.s32.totalorder %s70, %s72
    %p76 = scmp.eq.s32.totalorder %s10, 0
    %p77 = por %p75, %p76
    %p78 = scmp.ne.s32.totalorder %s70, %s72
    %p79 = scmp.eq.s32.totalorder %s15, 1
    %p80 = por %p78, %p79
    %p81 = scmp.ne.s32.totalorder %s72, %s73
    %p82 = scmp.eq.s32.totalorder %s15, 0
    %p83 = por %p81, %p82
    %p84 = scmp.ne.s32.totalorder %s72, %s73
    %p85 = scmp.eq.s32.totalorder %s16, 1
    %p86 = por %p84, %p85
    %p88 = scmp.ne.s32.totalorder %s73, %s87
    %p89 = scmp.eq.s32.totalorder %s16, 0
    %p90 = por %p88, %p89
    %s92 = sadd.s32 %s91, 1
    %p95 = scmp.eq.s32.totalorder %s10, 1
    %p96 = scmp.ne.s32.totalorder %s91, %s93
    %p97 = scmp.eq.s32.totalorder %s10, 0
    %p98 = por %p96, %p97
    %p99 = scmp.ne.s32.totalorder %s91, %s93
    %p100 = scmp.eq.s32.totalorder %s15, 1
    %p101 = por %p99, %p100
    %p102 = scmp.ne.s32.totalorder %s93, %s94
    %p103 = scmp.eq.s32.totalorder %s15, 0
    %p104 = por %p102, %p103
    %p105 = scmp.ne.s32.totalorder %s93, %s94
    %p106 = scmp.eq.s32.totalorder %s16, 1
    %p107 = por %p105, %p106
    %p109 = scmp.ne.s32.totalorder %s94, %s108
    %p110 = scmp.eq.s32.totalorder %s16, 0
    %p111 = por %p109, %p110
    %s112 = ssub.s32 %s10, %s17
    %p113 = scmp.eq.s32.totalorder %s112, 0
    %s115 = sadd.s32 %s114, 1
    %s116 = scalar_select %p113, %s114, %s115
    %p119 = pneg %p113
    %p120 = scmp.eq.s32.totalorder %s10, 1
    %p121 = por %p119, %p120
    %p122 = scmp.ne.s32.totalorder %s114, %s117
    %p123 = scmp.eq.s32.totalorder %s10, 0
    %p124 = por %p122, %p123
    %p125 = scmp.ne.s32.totalorder %s114, %s117
    %p126 = scmp.eq.s32.totalorder %s15, 1
    %p127 = por %p125, %p126
    %p128 = scmp.ne.s32.totalorder %s117, %s118
    %p129 = scmp.eq.s32.totalorder %s15, 0
    %p130 = por %p128, %p129
    %p131 = scmp.ne.s32.totalorder %s117, %s118
    %p132 = scmp.eq.s32.totalorder %s16, 1
    %p133 = por %p131, %p132
    %p135 = scmp.ne.s32.totalorder %s118, %s134
    %p136 = scmp.eq.s32.totalorder %s16, 0
    %p137 = por %p135, %p136
    %p138 = scmp.le.s32.totalorder 1, %s10
    %p139 = scmp.lt.s32.totalorder %s10, 3
    %p140 = pnand %p138, %p139
    %p141 = pneg %p140
    // Predicated region
    $region9: #{tpu_custom_call.1} parent=5 // pred_check
      _
    $region10: #{tpu_custom_call.1} parent=5 // pred_check_branch
      %143 = sbr.rel (%p140) target = $region12
    $region11: #{tpu_custom_call.1} parent=5 // pred_region
      %s144 = ssub.s32 %s10, 1
      // Predicated region
      $region13: #{tpu_custom_call.1} parent=11 // pred_check
        %p145 = pneg %p83
      $region14: #{tpu_custom_call.1} parent=11 // pred_check_branch
        %147 = sbr.rel (%p145) target = $region16
      $region15: #{tpu_custom_call.1} parent=11 // pred_region
        _
      $region16: #{tpu_custom_call.1} parent=11 // pred_fallthru
        _
      // Predicated region
      $region17: #{tpu_custom_call.1} parent=11 // pred_check
        %p148 = pneg %p104
      $region18: #{tpu_custom_call.1} parent=11 // pred_check_branch
        %150 = sbr.rel (%p148) target = $region20
      $region19: #{tpu_custom_call.1} parent=11 // pred_region
        _
      $region20: #{tpu_custom_call.1} parent=11 // pred_fallthru
        _
    $region12: #{tpu_custom_call.1} parent=5 // pred_fallthru
      _
    %p151 = scmp.lt.s32.totalorder %s10, 2
    // Predicated region
    $region21: #{tpu_custom_call.1} parent=5 // pred_check
      %p152 = pneg %p151
    $region22: #{tpu_custom_call.1} parent=5 // pred_check_branch
      %154 = sbr.rel (%p152) target = $region24
    $region23: #{tpu_custom_call.1} parent=5 // pred_region
      // Predicated region
      $region25: #{tpu_custom_call.1} parent=23 // pred_check
        %p155 = pneg %p30
      $region26: #{tpu_custom_call.1} parent=23 // pred_check_branch
        %157 = sbr.rel (%p155) target = $region28
      $region27: #{tpu_custom_call.1} parent=23 // pred_region
        %p158 = scmp.lt.s32.totalorder %s10, 1
        %s159 = scalar_select %p158, %s10, 1
        %s160 = smul.addr %s159, 8
        %s161 = smul.addr %s160, 8
        %s162 = scalar_lea.vmem %s0, %s161
      $region28: #{tpu_custom_call.1} parent=23 // pred_fallthru
        _
      // Predicated region
      $region29: #{tpu_custom_call.1} parent=23 // pred_check
        %p163 = pneg %p56
      $region30: #{tpu_custom_call.1} parent=23 // pred_check_branch
        %165 = sbr.rel (%p163) target = $region32
      $region31: #{tpu_custom_call.1} parent=23 // pred_region
        %p166 = scmp.lt.s32.totalorder %s10, 1
        %s167 = scalar_select %p166, %s10, 1
        %s168 = scalar_lea.vmem %s1, %s167
      $region32: #{tpu_custom_call.1} parent=23 // pred_fallthru
        _
    $region24: #{tpu_custom_call.1} parent=5 // pred_fallthru
      _
    %p169 = scmp.le.s32.totalorder 1, %s10
    %p170 = scmp.lt.s32.totalorder %s10, 3
    %p171 = pnand %p169, %p170
    %p172 = pneg %p171
    // Predicated region
    $region33: #{tpu_custom_call.1} parent=5 // pred_check
      _
    $region34: #{tpu_custom_call.1} parent=5 // pred_check_branch
      %174 = sbr.rel (%p171) target = $region36
    $region35: #{tpu_custom_call.1} parent=5 // pred_region
      %s175 = ssub.s32 %s10, 1
      %p176 = scmp.lt.s32.totalorder %s15, 1
      %s177 = scalar_select %p176, %s15, 1
      %s178 = smul.addr %s177, 8
      %s179 = smul.addr %s178, 8
      %s180 = scalar_lea.vmem %s0, %s179
      %p181 = pneg %p36
      %p182 = pneg %p33
      %p183 = scmp.lt.s32.totalorder %s15, 1
      %s184 = scalar_select %p183, %s15, 1
      %s185 = scalar_lea.vmem %s1, %s184
      %p186 = pneg %p62
      %p187 = pneg %p59
      %p188 = pneg %p83
      %p189 = pneg %p80
      %p190 = pneg %p104
      %p191 = pneg %p101
      %p192 = pneg %p130
      %p193 = pneg %p127
      %p194 = scmp.lt.s32.totalorder %s15, 1
      %s195 = scalar_select %p194, %s15, 1
      %s196 = smul.addr %s195, 8
      %s197 = smul.addr %s196, 8
      %s198 = scalar_lea.vmem %s4, %s197
      %p199 = scmp.lt.s32.totalorder %s15, 1
      %s200 = scalar_select %p199, %s15, 1
      %s201 = smul.addr %s200, 8
      %s202 = smul.addr %s201, 8
      %s203 = scalar_lea.vmem %s0, %s202
      %p204 = scmp.lt.s32.totalorder %s15, 1
      %s205 = scalar_select %p204, %s15, 1
      %s206 = scalar_lea.vmem %s1, %s205
      %p207 = scmp.lt.s32.totalorder %s15, 1
      %s208 = scalar_select %p207, %s15, 1
      %s209 = smul.addr %s208, 8
      %s210 = smul.addr %s209, 8
      %s211 = scalar_lea.vmem %s4, %s210
      %v212 = vld [vmem:[%s203] sm:$0xff]
      %v213 = vld [vmem:[%s203 + $0x8] sm:$0xff]
      %v214 = vld [vmem:[%s203 + $0x10] sm:$0xff]
      %v215 = vld [vmem:[%s203 + $0x18] sm:$0xff]
      %v216 = vld [vmem:[%s203 + $0x20] sm:$0xff]
      %v217 = vld [vmem:[%s203 + $0x28] sm:$0xff]
      %v218 = vld [vmem:[%s203 + $0x30] sm:$0xff]
      %v219 = vld [vmem:[%s203 + $0x38] sm:$0xff]
      %v220 = vld [vmem:[%s206] sm:$0x1]
      %v221 = vld [vmem:[%s3] sm:$0x3f]
      %v222 = vld [vmem:[%s2] sm:$0xff]
      %v223 = vld [vmem:[%s2 + $0x8] sm:$0xff]
      %v224 = vld [vmem:[%s2 + $0x10] sm:$0xff]
      %v225 = vld [vmem:[%s2 + $0x18] sm:$0xff]
      %vm226 = vcmask 261120
      %v228 = vsel %vm226, %v220, 0
      %230 = vmatprep.subr.mxu0 0.0
      %231 = vmatpush1.msra.mxu0 0.0
      %232 = vmatprep.subr.mxu0 0.0
      %233 = vmatpush1.msra.mxu0 0.0
      %234 = vmatprep.subr.mxu0 0.0
      %235 = vmatpush1.msra.mxu0 0.0
      %236 = vmatprep.subr.mxu0 0.0
      %237 = vmatpush1.msra.mxu0 0.0
      %238 = vmatprep.subr.mxu0 0.0
      %239 = vmatpush1.msra.mxu0 0.0
      %240 = vmatprep.subr.mxu0 0.0
      %241 = vmatpush1.msra.mxu0 0.0
      %242 = vmatprep.subr.mxu0 0.0
      %243 = vmatpush1.msra.mxu0 0.0
      %244 = vmatprep.subr.mxu0 0.0
      %245 = vmatpush1.msra.mxu0 0.0
      %246 = vmatprep.subr.mxu0 0.0
      %247 = vmatpush1.msra.mxu0 0.0
      %248 = vmatprep.subr.mxu0 0.0
      %249 = vmatpush1.msra.mxu0 0.0
      %250 = vmatprep.subr.mxu0 0.0
      %251 = vmatpush1.msra.mxu0 0.0
      %252 = vmatprep.subr.mxu0 0.0
      %253 = vmatpush1.msra.mxu0 0.0
      %254 = vmatprep.subr.mxu0 0.0
      %255 = vmatpush1.msra.mxu0 %v225
      %256 = vmatprep.subr.mxu0 0.0
      %257 = vmatpush1.msra.mxu0 %v224
      %258 = vmatprep.subr.mxu0 0.0
      %259 = vmatpush1.msra.mxu0 %v223
      %260 = vmatprep.subr.mxu0 0.0
      %261 = vmatpush1.msra.mxu0 %v222
      %262 = vmatprep.subr.mxu0 0.0
      %263 = vmatpush2.msra.mxu0 0.0
      %264 = vmatprep.subr.mxu0 0.0
      %265 = vmatpush2.msra.mxu0 0.0
      %266 = vmatprep.subr.mxu0 0.0
      %267 = vmatpush2.msra.mxu0 0.0
      %268 = vmatprep.subr.mxu0 0.0
      %269 = vmatpush2.msra.mxu0 0.0
      %270 = vmatprep.subr.mxu0 0.0
      %271 = vmatpush2.msra.mxu0 0.0
      %272 = vmatprep.subr.mxu0 0.0
      %273 = vmatpush2.msra.mxu0 0.0
      %274 = vmatprep.subr.mxu0 0.0
      %275 = vmatpush2.msra.mxu0 0.0
      %276 = vmatprep.subr.mxu0 0.0
      %277 = vmatpush2.msra.mxu0 0.0
      %278 = vmatprep.subr.mxu0 0.0
      %279 = vmatpush2.msra.mxu0 0.0
      %280 = vmatprep.subr.mxu0 0.0
      %281 = vmatpush2.msra.mxu0 0.0
      %282 = vmatprep.subr.mxu0 0.0
      %283 = vmatpush2.msra.mxu0 0.0
      %284 = vmatprep.subr.mxu0 0.0
      %285 = vmatpush2.msra.mxu0 0.0
      %286 = vmatprep.subr.mxu0 0.0
      %287 = vmatpush2.msra.mxu0 0.0
      %288 = vmatprep.subr.mxu0 0.0
      %289 = vmatpush2.msra.mxu0 0.0
      %290 = vmatprep.subr.mxu0 0.0
      %291 = vmatpush2.msra.mxu0 0.0
      %292 = vmatprep.subr.mxu0 0.0
      %293 = vmatpush2.msra.mxu0 0.0
      %294 = vmatprep.mubr.f32.mxu0 0.0
      %295 = vmatmul.mubr.f32.gmra.mxu0 %v228
      %v296 = vpop.f32.mrf.mxu0
      %v297 = vadd.f32 %v221, %v296
      %v298 = vpop.f32.mrf.mxu0
      %299 = vdwg.mxu0
      %v300 = vmax.f32 %v297, 0.0
      %s301 = scalar_lea.vmem %s2, 32
      %v302 = vld [vmem:[%s301] sm:$0xff]
      %v303 = vld [vmem:[%s301 + $0x8] sm:$0xff]
      %v304 = vld [vmem:[%s301 + $0x10] sm:$0xff]
      %v305 = vld [vmem:[%s301 + $0x18] sm:$0xff]
      %v307 = vrot.slane %v221, 1
      %v310 = vsel %vm226, %v300, 0
      %312 = vmatprep.subr.mxu0 0.0
      %313 = vmatpush1.msra.mxu0 0.0
      %314 = vmatprep.subr.mxu0 0.0
      %315 = vmatpush1.msra.mxu0 0.0
      %316 = vmatprep.subr.mxu0 0.0
      %317 = vmatpush1.msra.mxu0 0.0
      %318 = vmatprep.subr.mxu0 0.0
      %319 = vmatpush1.msra.mxu0 0.0
      %320 = vmatprep.subr.mxu0 0.0
      %321 = vmatpush1.msra.mxu0 0.0
      %322 = vmatprep.subr.mxu0 0.0
      %323 = vmatpush1.msra.mxu0 0.0
      %324 = vmatprep.subr.mxu0 0.0
      %325 = vmatpush1.msra.mxu0 0.0
      %326 = vmatprep.subr.mxu0 0.0
      %327 = vmatpush1.msra.mxu0 0.0
      %328 = vmatprep.subr.mxu0 0.0
      %329 = vmatpush1.msra.mxu0 0.0
      %330 = vmatprep.subr.mxu0 0.0
      %331 = vmatpush1.msra.mxu0 0.0
      %332 = vmatprep.subr.mxu0 0.0
      %333 = vmatpush1.msra.mxu0 0.0
      %334 = vmatprep.subr.mxu0 0.0
      %335 = vmatpush1.msra.mxu0 0.0
      %336 = vmatprep.subr.mxu0 0.0
      %337 = vmatpush1.msra.mxu0 %v305
      %338 = vmatprep.subr.mxu0 0.0
      %339 = vmatpush1.msra.mxu0 %v304
      %340 = vmatprep.subr.mxu0 0.0
      %341 = vmatpush1.msra.mxu0 %v303
      %342 = vmatprep.subr.mxu0 0.0
      %343 = vmatpush1.msra.mxu0 %v302
      %344 = vmatprep.subr.mxu0 0.0
      %345 = vmatpush2.msra.mxu0 0.0
      %346 = vmatprep.subr.mxu0 0.0
      %347 = vmatpush2.msra.mxu0 0.0
      %348 = vmatprep.subr.mxu0 0.0
      %349 = vmatpush2.msra.mxu0 0.0
      %350 = vmatprep.subr.mxu0 0.0
      %351 = vmatpush2.msra.mxu0 0.0
      %352 = vmatprep.subr.mxu0 0.0
      %353 = vmatpush2.msra.mxu0 0.0
      %354 = vmatprep.subr.mxu0 0.0
      %355 = vmatpush2.msra.mxu0 0.0
      %356 = vmatprep.subr.mxu0 0.0
      %357 = vmatpush2.msra.mxu0 0.0
      %358 = vmatprep.subr.mxu0 0.0
      %359 = vmatpush2.msra.mxu0 0.0
      %360 = vmatprep.subr.mxu0 0.0
      %361 = vmatpush2.msra.mxu0 0.0
      %362 = vmatprep.subr.mxu0 0.0
      %363 = vmatpush2.msra.mxu0 0.0
      %364 = vmatprep.subr.mxu0 0.0
      %365 = vmatpush2.msra.mxu0 0.0
      %366 = vmatprep.subr.mxu0 0.0
      %367 = vmatpush2.msra.mxu0 0.0
      %368 = vmatprep.subr.mxu0 0.0
      %369 = vmatpush2.msra.mxu0 0.0
      %370 = vmatprep.subr.mxu0 0.0
      %371 = vmatpush2.msra.mxu0 0.0
      %372 = vmatprep.subr.mxu0 0.0
      %373 = vmatpush2.msra.mxu0 0.0
      %374 = vmatprep.subr.mxu0 0.0
      %375 = vmatpush2.msra.mxu0 0.0
      %376 = vmatprep.mubr.f32.mxu0 0.0
      %377 = vmatmul.mubr.f32.gmra.mxu0 %v310
      %v378 = vpop.f32.mrf.mxu0
      %v379 = vadd.f32 %v307, %v378
      %v380 = vpop.f32.mrf.mxu0
      %381 = vdwg.mxu0
      %s382 = scalar_lea.vmem %s2, 64
      %v383 = vld [vmem:[%s382] sm:$0xff]
      %v384 = vld [vmem:[%s382 + $0x8] sm:$0xff]
      %v385 = vld [vmem:[%s382 + $0x10] sm:$0xff]
      %v386 = vld [vmem:[%s382 + $0x18] sm:$0xff]
      %v387 = vrot.slane %v221, 2
      %v390 = vsel %vm226, %v379, 0
      %392 = vmatprep.subr.mxu0 0.0
      %393 = vmatpush1.msra.mxu0 0.0
      %394 = vmatprep.subr.mxu0 0.0
      %395 = vmatpush1.msra.mxu0 0.0
      %396 = vmatprep.subr.mxu0 0.0
      %397 = vmatpush1.msra.mxu0 0.0
      %398 = vmatprep.subr.mxu0 0.0
      %399 = vmatpush1.msra.mxu0 0.0
      %400 = vmatprep.subr.mxu0 0.0
      %401 = vmatpush1.msra.mxu0 0.0
      %402 = vmatprep.subr.mxu0 0.0
      %403 = vmatpush1.msra.mxu0 0.0
      %404 = vmatprep.subr.mxu0 0.0
      %405 = vmatpush1.msra.mxu0 0.0
      %406 = vmatprep.subr.mxu0 0.0
      %407 = vmatpush1.msra.mxu0 0.0
      %408 = vmatprep.subr.mxu0 0.0
      %409 = vmatpush1.msra.mxu0 0.0
      %410 = vmatprep.subr.mxu0 0.0
      %411 = vmatpush1.msra.mxu0 0.0
      %412 = vmatprep.subr.mxu0 0.0
      %413 = vmatpush1.msra.mxu0 0.0
      %414 = vmatprep.subr.mxu0 0.0
      %415 = vmatpush1.msra.mxu0 0.0
      %416 = vmatprep.subr.mxu0 0.0
      %417 = vmatpush1.msra.mxu0 %v386
      %418 = vmatprep.subr.mxu0 0.0
      %419 = vmatpush1.msra.mxu0 %v385
      %420 = vmatprep.subr.mxu0 0.0
      %421 = vmatpush1.msra.mxu0 %v384
      %422 = vmatprep.subr.mxu0 0.0
      %423 = vmatpush1.msra.mxu0 %v383
      %424 = vmatprep.subr.mxu0 0.0
      %425 = vmatpush2.msra.mxu0 0.0
      %426 = vmatprep.subr.mxu0 0.0
      %427 = vmatpush2.msra.mxu0 0.0
      %428 = vmatprep.subr.mxu0 0.0
      %429 = vmatpush2.msra.mxu0 0.0
      %430 = vmatprep.subr.mxu0 0.0
      %431 = vmatpush2.msra.mxu0 0.0
      %432 = vmatprep.subr.mxu0 0.0
      %433 = vmatpush2.msra.mxu0 0.0
      %434 = vmatprep.subr.mxu0 0.0
      %435 = vmatpush2.msra.mxu0 0.0
      %436 = vmatprep.subr.mxu0 0.0
      %437 = vmatpush2.msra.mxu0 0.0
      %438 = vmatprep.subr.mxu0 0.0
      %439 = vmatpush2.msra.mxu0 0.0
      %440 = vmatprep.subr.mxu0 0.0
      %441 = vmatpush2.msra.mxu0 0.0
      %442 = vmatprep.subr.mxu0 0.0
      %443 = vmatpush2.msra.mxu0 0.0
      %444 = vmatprep.subr.mxu0 0.0
      %445 = vmatpush2.msra.mxu0 0.0
      %446 = vmatprep.subr.mxu0 0.0
      %447 = vmatpush2.msra.mxu0 0.0
      %448 = vmatprep.subr.mxu0 0.0
      %449 = vmatpush2.msra.mxu0 0.0
      %450 = vmatprep.subr.mxu0 0.0
      %451 = vmatpush2.msra.mxu0 0.0
      %452 = vmatprep.subr.mxu0 0.0
      %453 = vmatpush2.msra.mxu0 0.0
      %454 = vmatprep.subr.mxu0 0.0
      %455 = vmatpush2.msra.mxu0 0.0
      %456 = vmatprep.mubr.f32.mxu0 0.0
      %457 = vmatmul.mubr.f32.gmra.mxu0 %v390
      %v458 = vpop.f32.mrf.mxu0
      %v459 = vadd.f32 %v387, %v458
      %v460 = vpop.f32.mrf.mxu0
      %461 = vdwg.mxu0
      %s462 = scalar_lea.vmem %s2, 96
      %v463 = vld [vmem:[%s462] sm:$0xff]
      %v464 = vld [vmem:[%s462 + $0x8] sm:$0xff]
      %v465 = vld [vmem:[%s462 + $0x10] sm:$0xff]
      %v466 = vld [vmem:[%s462 + $0x18] sm:$0xff]
      %v467 = vrot.slane %v221, 3
      %v470 = vsel %vm226, %v459, 0
      %472 = vmatprep.subr.mxu0 0.0
      %473 = vmatpush1.msra.mxu0 0.0
      %474 = vmatprep.subr.mxu0 0.0
      %475 = vmatpush1.msra.mxu0 0.0
      %476 = vmatprep.subr.mxu0 0.0
      %477 = vmatpush1.msra.mxu0 0.0
      %478 = vmatprep.subr.mxu0 0.0
      %479 = vmatpush1.msra.mxu0 0.0
      %480 = vmatprep.subr.mxu0 0.0
      %481 = vmatpush1.msra.mxu0 0.0
      %482 = vmatprep.subr.mxu0 0.0
      %483 = vmatpush1.msra.mxu0 0.0
      %484 = vmatprep.subr.mxu0 0.0
      %485 = vmatpush1.msra.mxu0 0.0
      %486 = vmatprep.subr.mxu0 0.0
      %487 = vmatpush1.msra.mxu0 0.0
      %488 = vmatprep.subr.mxu0 0.0
      %489 = vmatpush1.msra.mxu0 0.0
      %490 = vmatprep.subr.mxu0 0.0
      %491 = vmatpush1.msra.mxu0 0.0
      %492 = vmatprep.subr.mxu0 0.0
      %493 = vmatpush1.msra.mxu0 0.0
      %494 = vmatprep.subr.mxu0 0.0
      %495 = vmatpush1.msra.mxu0 0.0
      %496 = vmatprep.subr.mxu0 0.0
      %497 = vmatpush1.msra.mxu0 %v466
      %498 = vmatprep.subr.mxu0 0.0
      %499 = vmatpush1.msra.mxu0 %v465
      %500 = vmatprep.subr.mxu0 0.0
      %501 = vmatpush1.msra.mxu0 %v464
      %502 = vmatprep.subr.mxu0 0.0
      %503 = vmatpush1.msra.mxu0 %v463
      %504 = vmatprep.subr.mxu0 0.0
      %505 = vmatpush2.msra.mxu0 0.0
      %506 = vmatprep.subr.mxu0 0.0
      %507 = vmatpush2.msra.mxu0 0.0
      %508 = vmatprep.subr.mxu0 0.0
      %509 = vmatpush2.msra.mxu0 0.0
      %510 = vmatprep.subr.mxu0 0.0
      %511 = vmatpush2.msra.mxu0 0.0
      %512 = vmatprep.subr.mxu0 0.0
      %513 = vmatpush2.msra.mxu0 0.0
      %514 = vmatprep.subr.mxu0 0.0
      %515 = vmatpush2.msra.mxu0 0.0
      %516 = vmatprep.subr.mxu0 0.0
      %517 = vmatpush2.msra.mxu0 0.0
      %518 = vmatprep.subr.mxu0 0.0
      %519 = vmatpush2.msra.mxu0 0.0
      %520 = vmatprep.subr.mxu0 0.0
      %521 = vmatpush2.msra.mxu0 0.0
      %522 = vmatprep.subr.mxu0 0.0
      %523 = vmatpush2.msra.mxu0 0.0
      %524 = vmatprep.subr.mxu0 0.0
      %525 = vmatpush2.msra.mxu0 0.0
      %526 = vmatprep.subr.mxu0 0.0
      %527 = vmatpush2.msra.mxu0 0.0
      %528 = vmatprep.subr.mxu0 0.0
      %529 = vmatpush2.msra.mxu0 0.0
      %530 = vmatprep.subr.mxu0 0.0
      %531 = vmatpush2.msra.mxu0 0.0
      %532 = vmatprep.subr.mxu0 0.0
      %533 = vmatpush2.msra.mxu0 0.0
      %534 = vmatprep.subr.mxu0 0.0
      %535 = vmatpush2.msra.mxu0 0.0
      %536 = vmatprep.mubr.f32.mxu0 0.0
      %537 = vmatmul.mubr.f32.gmra.mxu0 %v470
      %v538 = vpop.f32.mrf.mxu0
      %v539 = vadd.f32 %v467, %v538
      %v540 = vpop.f32.mrf.mxu0
      %541 = vdwg.mxu0
      %v542 = vlaneseq
      %v543 = vshrl.u32 %v542, 7
      %v544 = vsub.s32 0, %v543
      %v545 = vrot.slane %v539, %v544
      %v546 = vadd.f32 %v212, %v545
      %v547 = vadd.f32 %v213, %v545
      %v548 = vadd.f32 %v214, %v545
      %v549 = vadd.f32 %v215, %v545
      %v550 = vadd.f32 %v216, %v545
      %v551 = vadd.f32 %v217, %v545
      %v552 = vadd.f32 %v218, %v545
      %v553 = vadd.f32 %v219, %v545
      %v554 = vsel %vm226, %v546, 0.0
      %555 = vadd.xlane.f32.xlu0 %v554
      %v556 = vpop.xlane.xlu0 %555
      %v557 = vsel %vm226, %v547, 0.0
      %558 = vadd.xlane.f32.xlu0 %v557
      %v559 = vpop.xlane.xlu0 %558
      %v560 = vsel %vm226, %v548, 0.0
      %561 = vadd.xlane.f32.xlu0 %v560
      %v562 = vpop.xlane.xlu0 %561
      %v563 = vsel %vm226, %v549, 0.0
      %564 = vadd.xlane.f32.xlu0 %v563
      %v565 = vpop.xlane.xlu0 %564
      %v566 = vsel %vm226, %v550, 0.0
      %567 = vadd.xlane.f32.xlu0 %v566
      %v568 = vpop.xlane.xlu0 %567
      %v569 = vsel %vm226, %v551, 0.0
      %570 = vadd.xlane.f32.xlu0 %v569
      %v571 = vpop.xlane.xlu0 %570
      %v572 = vsel %vm226, %v552, 0.0
      %573 = vadd.xlane.f32.xlu0 %v572
      %v574 = vpop.xlane.xlu0 %573
      %v575 = vsel %vm226, %v553, 0.0
      %576 = vadd.xlane.f32.xlu0 %v575
      %v577 = vpop.xlane.xlu0 %576
      %v578 = vrcp.pop 32.0
      %v579 = vmul.f32 %v556, %v578
      %v580 = vmul.f32 %v559, %v578
      %v581 = vmul.f32 %v562, %v578
      %v582 = vmul.f32 %v565, %v578
      %v583 = vmul.f32 %v568, %v578
      %v584 = vmul.f32 %v571, %v578
      %v585 = vmul.f32 %v574, %v578
      %v586 = vmul.f32 %v577, %v578
      %v587 = vsub.f32 %v546, %v579
      %v588 = vsub.f32 %v547, %v580
      %v589 = vsub.f32 %v548, %v581
      %v590 = vsub.f32 %v549, %v582
      %v591 = vsub.f32 %v550, %v583
      %v592 = vsub.f32 %v551, %v584
      %v593 = vsub.f32 %v552, %v585
      %v594 = vsub.f32 %v553, %v586
      %v595 = vmul.f32 %v587, %v587
      %v596 = vmul.f32 %v588, %v588
      %v597 = vmul.f32 %v589, %v589
      %v598 = vmul.f32 %v590, %v590
      %v599 = vmul.f32 %v591, %v591
      %v600 = vmul.f32 %v592, %v592
      %v601 = vmul.f32 %v593, %v593
      %v602 = vmul.f32 %v594, %v594
      %v603 = vsel %vm226, %v595, 0.0
      %604 = vadd.xlane.f32.xlu0 %v603
      %v605 = vpop.xlane.xlu0 %604
      %v606 = vsel %vm226, %v596, 0.0
      %607 = vadd.xlane.f32.xlu0 %v606
      %v608 = vpop.xlane.xlu0 %607
      %v609 = vsel %vm226, %v597, 0.0
      %610 = vadd.xlane.f32.xlu0 %v609
      %v611 = vpop.xlane.xlu0 %610
      %v612 = vsel %vm226, %v598, 0.0
      %613 = vadd.xlane.f32.xlu0 %v612
      %v614 = vpop.xlane.xlu0 %613
      %v615 = vsel %vm226, %v599, 0.0
      %616 = vadd.xlane.f32.xlu0 %v615
      %v617 = vpop.xlane.xlu0 %616
      %v618 = vsel %vm226, %v600, 0.0
      %619 = vadd.xlane.f32.xlu0 %v618
      %v620 = vpop.xlane.xlu0 %619
      %v621 = vsel %vm226, %v601, 0.0
      %622 = vadd.xlane.f32.xlu0 %v621
      %v623 = vpop.xlane.xlu0 %622
      %v624 = vsel %vm226, %v602, 0.0
      %625 = vadd.xlane.f32.xlu0 %v624
      %v626 = vpop.xlane.xlu0 %625
      %v627 = vmul.f32 %v605, %v578
      %v628 = vmul.f32 %v608, %v578
      %v629 = vmul.f32 %v611, %v578
      %v630 = vmul.f32 %v614, %v578
      %v631 = vmul.f32 %v617, %v578
      %v632 = vmul.f32 %v620, %v578
      %v633 = vmul.f32 %v623, %v578
      %v634 = vmul.f32 %v626, %v578
      %v635 = vadd.f32 %v627, 1e-05
      %v636 = vadd.f32 %v628, 1e-05
      %v637 = vadd.f32 %v629, 1e-05
      %v638 = vadd.f32 %v630, 1e-05
      %v639 = vadd.f32 %v631, 1e-05
      %v640 = vadd.f32 %v632, 1e-05
      %v641 = vadd.f32 %v633, 1e-05
      %v642 = vadd.f32 %v634, 1e-05
      %v643 = vrsqrt.pop %v635
      %v644 = vrsqrt.pop %v636
      %v645 = vrsqrt.pop %v637
      %v646 = vrsqrt.pop %v638
      %v647 = vrsqrt.pop %v639
      %v648 = vrsqrt.pop %v640
      %v649 = vrsqrt.pop %v641
      %v650 = vrsqrt.pop %v642
      %v651 = vmul.f32 %v587, %v643
      %v652 = vmul.f32 %v588, %v644
      %v653 = vmul.f32 %v589, %v645
      %v654 = vmul.f32 %v590, %v646
      %v655 = vmul.f32 %v591, %v647
      %v656 = vmul.f32 %v592, %v648
      %v657 = vmul.f32 %v593, %v649
      %v658 = vmul.f32 %v594, %v650
      %v659 = vlaneseq
      %v660 = vshrl.u32 %v659, 7
      %v661 = vsub.s32 4, %v660
      %v662 = vrot.slane %v221, %v661
      %v663 = vmul.f32 %v651, %v662
      %v664 = vmul.f32 %v652, %v662
      %v665 = vmul.f32 %v653, %v662
      %v666 = vmul.f32 %v654, %v662
      %v667 = vmul.f32 %v655, %v662
      %v668 = vmul.f32 %v656, %v662
      %v669 = vmul.f32 %v657, %v662
      %v670 = vmul.f32 %v658, %v662
      %v671 = vlaneseq
      %v672 = vshrl.u32 %v671, 7
      %v673 = vsub.s32 5, %v672
      %v674 = vrot.slane %v221, %v673
      %v675 = vadd.f32 %v663, %v674
      %v676 = vadd.f32 %v664, %v674
      %v677 = vadd.f32 %v665, %v674
      %v678 = vadd.f32 %v666, %v674
      %v679 = vadd.f32 %v667, %v674
      %v680 = vadd.f32 %v668, %v674
      %v681 = vadd.f32 %v669, %v674
      %v682 = vadd.f32 %v670, %v674
      %683 = vst.msk [vmem:[%s211] sm:$0xff] %vm226, %v675
      %684 = vst.msk [vmem:[%s211 + $0x8] sm:$0xff] %vm226, %v676
      %685 = vst.msk [vmem:[%s211 + $0x10] sm:$0xff] %vm226, %v677
      %686 = vst.msk [vmem:[%s211 + $0x18] sm:$0xff] %vm226, %v678
      %687 = vst.msk [vmem:[%s211 + $0x20] sm:$0xff] %vm226, %v679
      %688 = vst.msk [vmem:[%s211 + $0x28] sm:$0xff] %vm226, %v680
      %689 = vst.msk [vmem:[%s211 + $0x30] sm:$0xff] %vm226, %v681
      %690 = vst.msk [vmem:[%s211 + $0x38] sm:$0xff] %vm226, %v682
      %p691 = scmp.lt.s32.totalorder %s15, 1
      %s692 = scalar_select %p691, %s15, 1
      %s693 = smul.addr %s692, 8
      %s694 = smul.addr %s693, 8
      %s695 = scalar_lea.vmem %s4, %s694
      // Predicated region
      $region37: #{tpu_custom_call.1} parent=35 // pred_check
        %p696 = pneg %p127
      $region38: #{tpu_custom_call.1} parent=35 // pred_check_branch
        %698 = sbr.rel (%p696) target = $region40
      $region39: #{tpu_custom_call.1} parent=35 // pred_region
        _
      $region40: #{tpu_custom_call.1} parent=35 // pred_fallthru
        _
    $region36: #{tpu_custom_call.1} parent=5 // pred_fallthru
      _
    %p699 = scmp.le.s32.totalorder 2, %s10
    // Predicated region
    $region41: #{tpu_custom_call.1} parent=5 // pred_check
      %p700 = pneg %p699
    $region42: #{tpu_custom_call.1} parent=5 // pred_check_branch
      %702 = sbr.rel (%p700) target = $region44
    $region43: #{tpu_custom_call.1} parent=5 // pred_region
      %s703 = ssub.s32 %s10, 2
      // Predicated region
      $region45: #{tpu_custom_call.1} parent=43 // pred_check
        %p704 = pneg %p133
      $region46: #{tpu_custom_call.1} parent=43 // pred_check_branch
        %706 = sbr.rel (%p704) target = $region48
      $region47: #{tpu_custom_call.1} parent=43 // pred_region
        %p707 = scmp.lt.s32.totalorder %s16, 1
        %s708 = scalar_select %p707, %s16, 1
        %s709 = smul.addr %s708, 8
        %s710 = smul.addr %s709, 8
        %s711 = scalar_lea.vmem %s4, %s710
      $region48: #{tpu_custom_call.1} parent=43 // pred_fallthru
        _
    $region44: #{tpu_custom_call.1} parent=5 // pred_fallthru
      _
  $region6: #{tpu_custom_call.1} parent=0 // loop_footer
    %s14 = sadd.s32 1, %s10
  $region7: #{tpu_custom_call.1} parent=0 // loop_footer_branch
    %9 = sbr.rel target = $region3
  $region8: #{tpu_custom_call.1} parent=0 // loop_exit
    _

</llo_original>
